<compile_context>
chip_gen: v6e
topology: v6e:2x2x1
jax: 0.10.0
libtpu: 0.0.40
codegen_flags: <defaults>
</compile_context>

<pallas_src>
import math

import jax
import jax.numpy as jnp
from jax import lax
from jax.experimental import pallas as pl
from jax.experimental.pallas import tpu as pltpu

D_STATE = 16
D_CONV = 4
EXPAND = 2
EPS = 1e-5


def _choose(n, pref, quantum):
    """Largest tile <= pref that exactly divides n and is a multiple of `quantum`.

    Falls back to the full extent (single block) when n <= pref or nothing fits,
    which always satisfies the TPU (8, 128) block rule ("equal full dim")."""
    if n <= pref:
        return n
    t = (pref // quantum) * quantum
    while t >= quantum:
        if n % t == 0:
            return t
        t -= quantum
    return n


# --------------------------- tiled matmul (MXU) ------------------------------

def _matmul_kernel(x_ref, w_ref, o_ref, acc_ref):
    @pl.when(pl.program_id(2) == 0)
    def _():
        acc_ref[...] = jnp.zeros_like(acc_ref)

    acc_ref[...] += jnp.dot(x_ref[...].astype(jnp.bfloat16), w_ref[...],
                            preferred_element_type=jnp.float32)

    @pl.when(pl.program_id(2) == pl.num_programs(2) - 1)
    def _():
        o_ref[...] = acc_ref[...]


def matmul(x, w):
    """x:(M,K) f32 @ w:(K,N) bf16 -> (M,N) f32 (bf16 MXU operands, f32 accum)."""
    M, K = x.shape
    N = w.shape[1]
    tm = _choose(M, 512, 8)
    tn = _choose(N, 256, 128)
    tk = _choose(K, 512, 128)
    return pl.pallas_call(
        _matmul_kernel,
        grid=(M // tm, N // tn, K // tk),
        in_specs=[pl.BlockSpec((tm, tk), lambda i, j, k: (i, k)),
                  pl.BlockSpec((tk, tn), lambda i, j, k: (k, j))],
        out_specs=pl.BlockSpec((tm, tn), lambda i, j, k: (i, j)),
        out_shape=jax.ShapeDtypeStruct((M, N), jnp.float32),
        scratch_shapes=[pltpu.VMEM((tm, tn), jnp.float32)],
        compiler_params=pltpu.CompilerParams(
            dimension_semantics=("parallel", "parallel", "arbitrary")),
    )(x, w)


# ------------------------ timestep-embedding MLP -----------------------------

def _temb_mlp_kernel(e_ref, w1_ref, b1_ref, w2_ref, b2_ref, o_ref):
    h = jnp.dot(e_ref[...].astype(jnp.bfloat16), w1_ref[...],
                preferred_element_type=jnp.float32) + b1_ref[...]
    h = jax.nn.gelu(h, approximate=True)          # GELU(approximate='tanh')
    h = jnp.dot(h.astype(jnp.bfloat16), w2_ref[...],
                preferred_element_type=jnp.float32) + b2_ref[...]
    o_ref[...] = jax.nn.gelu(h, approximate=True)


def temb_mlp(e, w1, b1, w2, b2):
    # (B, d_model) x (d_model, d_model): tiny -> single block is fine.
    M, D = e.shape
    return pl.pallas_call(
        _temb_mlp_kernel,
        out_shape=jax.ShapeDtypeStruct((M, D), jnp.float32),
    )(e, w1, b1, w2, b2)


# ------------------ fused residual(+temb) add + LayerNorm --------------------

def _make_add_ln_kernel(has_res, has_temb):
    def kernel(*refs):
        it = iter(refs)
        acc = next(it)[...]                    # hidden (tl, D)
        if has_res:
            acc = acc + next(it)[...]          # residual (tl, D)
        if has_temb:
            acc = acc + next(it)[...]          # temb (1, D) broadcast over rows
        g = next(it)[...]
        b = next(it)[...]
        o_ref = next(it)
        res_ref = next(it)
        res_ref[...] = acc
        mu = jnp.mean(acc, axis=-1, keepdims=True)
        var = jnp.mean(jnp.square(acc - mu), axis=-1, keepdims=True)
        o_ref[...] = (acc - mu) * lax.rsqrt(var + EPS) * g + b
    return kernel


def add_layernorm(h, residual, temb, gamma, beta):
    """LayerNorm(h [+ residual] [+ temb]); returns (normed, pre-norm residual).

    temb is (B, 1, D): broadcast happens inside the kernel (never materialized)."""
    B, L, D = h.shape
    tl = _choose(L, 512, 8)
    tile = pl.BlockSpec((None, tl, D), lambda b, l: (b, l, 0))
    in_specs = [tile]
    args = [h]
    if residual is not None:
        in_specs.append(tile)
        args.append(residual)
    if temb is not None:
        in_specs.append(pl.BlockSpec((None, 1, D), lambda b, l: (b, 0, 0)))
        args.append(temb)
    in_specs += [pl.BlockSpec((1, D), lambda b, l: (0, 0)),
                 pl.BlockSpec((1, D), lambda b, l: (0, 0))]
    args += [gamma, beta]
    out_shape = jax.ShapeDtypeStruct((B, L, D), jnp.float32)
    return pl.pallas_call(
        _make_add_ln_kernel(residual is not None, temb is not None),
        grid=(B, L // tl),
        in_specs=in_specs,
        out_specs=(tile, tile),
        out_shape=(out_shape, out_shape),
        compiler_params=pltpu.CompilerParams(
            dimension_semantics=("parallel", "parallel")),
    )(*args)


# -------------------- causal depthwise conv1d + SiLU -------------------------

def _conv_silu_kernel(x_ref, w_ref, b_ref, o_ref):
    # y[t, c] = SiLU( bias[c] + sum_k w[k, c] * x[t + k - (D_CONV-1), c] )
    # Causal boundary handled in-kernel; no HBM-side padding.
    x = x_ref[...]                               # (L, tD)
    w = w_ref[...]                               # (D_CONV, tD)
    L = x.shape[0]
    acc = x * w[D_CONV - 1:D_CONV, :]
    for s in range(1, D_CONV):                   # static taps: x[t - s]
        if s < L:
            shifted = jnp.concatenate(
                [jnp.zeros((s, x.shape[1]), x.dtype), x[:L - s, :]], axis=0)
            acc = acc + shifted * w[D_CONV - 1 - s:D_CONV - s, :]
    acc = acc + b_ref[...]
    o_ref[...] = acc * jax.nn.sigmoid(acc)       # SiLU


def conv_silu(x, w, b):
    B, L, Dh = x.shape
    tD = _choose(Dh, 512, 128)
    return pl.pallas_call(
        _conv_silu_kernel,
        grid=(B, Dh // tD),
        in_specs=[pl.BlockSpec((None, L, tD), lambda i, j: (i, 0, j)),
                  pl.BlockSpec((D_CONV, tD), lambda i, j: (0, j)),
                  pl.BlockSpec((1, tD), lambda i, j: (0, j))],
        out_specs=pl.BlockSpec((None, L, tD), lambda i, j: (i, 0, j)),
        out_shape=jax.ShapeDtypeStruct((B, L, Dh), jnp.float32),
        compiler_params=pltpu.CompilerParams(
            dimension_semantics=("parallel", "parallel")),
    )(x, w, b)


# --------------------- fused x_proj + dt_proj projection ---------------------

def _xproj_dtproj_kernel(u_ref, wdt_lo_ref, wB_ref, wC_ref, wdt_hi_ref,
                         dlt_ref, B_ref, C_ref, acc_dt, acc_B, acc_C):
    k = pl.program_id(1)

    @pl.when(k == 0)
    def _():
        acc_dt[...] = jnp.zeros_like(acc_dt)
        acc_B[...] = jnp.zeros_like(acc_B)
        acc_C[...] = jnp.zeros_like(acc_C)

    u = u_ref[...].astype(jnp.bfloat16)
    acc_dt[...] += jnp.dot(u, wdt_lo_ref[...], preferred_element_type=jnp.float32)
    acc_B[...] += jnp.dot(u, wB_ref[...], preferred_element_type=jnp.float32)
    acc_C[...] += jnp.dot(u, wC_ref[...], preferred_element_type=jnp.float32)

    @pl.when(k == pl.num_programs(1) - 1)
    def _():
        B_ref[...] = acc_B[...]
        C_ref[...] = acc_C[...]
        dlt_ref[...] = jnp.dot(acc_dt[...].astype(jnp.bfloat16), wdt_hi_ref[...],
                               preferred_element_type=jnp.float32)


def xproj_dtproj(u, w_dt_lo, w_B, w_C, w_dt_hi):
    """Fused x_proj (-> dt_low, B, C) and dt_proj(dt_low) -> delta_raw.

    The narrow dt_rank / d_state intermediates stay in VMEM accumulators; only
    delta (M, d_inner) and the tiny B/C (M, d_state) hit HBM."""
    M, K = u.shape
    dt_rank = w_dt_lo.shape[1]
    d_state = w_B.shape[1]
    N = w_dt_hi.shape[1]
    tm = _choose(M, 256, 8)
    tk = _choose(K, 512, 128)
    return pl.pallas_call(
        _xproj_dtproj_kernel,
        grid=(M // tm, K // tk),
        in_specs=[pl.BlockSpec((tm, tk), lambda i, k: (i, k)),
                  pl.BlockSpec((tk, dt_rank), lambda i, k: (k, 0)),
                  pl.BlockSpec((tk, d_state), lambda i, k: (k, 0)),
                  pl.BlockSpec((tk, d_state), lambda i, k: (k, 0)),
                  pl.BlockSpec((dt_rank, N), lambda i, k: (0, 0))],
        out_specs=(pl.BlockSpec((tm, N), lambda i, k: (i, 0)),
                   pl.BlockSpec((tm, d_state), lambda i, k: (i, 0)),
                   pl.BlockSpec((tm, d_state), lambda i, k: (i, 0))),
        out_shape=(jax.ShapeDtypeStruct((M, N), jnp.float32),
                   jax.ShapeDtypeStruct((M, d_state), jnp.float32),
                   jax.ShapeDtypeStruct((M, d_state), jnp.float32)),
        scratch_shapes=[pltpu.VMEM((tm, dt_rank), jnp.float32),
                        pltpu.VMEM((tm, d_state), jnp.float32),
                        pltpu.VMEM((tm, d_state), jnp.float32)],
        compiler_params=pltpu.CompilerParams(
            dimension_semantics=("parallel", "arbitrary")),
    )(u, w_dt_lo, w_B, w_C, w_dt_hi)


# -------------------------- chunked selective scan ---------------------------

def _scan_kernel(u_ref, dt_ref, z_ref, Bt_ref, Ct_ref, At_ref, D_ref, dtb_ref,
                 o_ref, h_ref):
    # One (batch, d_inner-block, time-chunk) tile of the SSM recurrence
    # (selective_scan_ref semantics, delta_softplus=True, fused D-skip + SiLU(z) gate).
    @pl.when(pl.program_id(2) == 0)
    def _():
        h_ref[...] = jnp.zeros_like(h_ref)

    T = u_ref.shape[0]
    At = At_ref[...]                                     # (d_state, dh)  A.T, A = -exp(A_log)
    Dv = D_ref[...]                                      # (1, dh)
    u = u_ref[...]                                       # (T, dh)  whole-chunk slab loads
    z = z_ref[...]                                       # (T, dh)
    delta = jax.nn.softplus(dt_ref[...] + dtb_ref[...])  # (T, dh)  hoisted off the recurrence
    Bt = Bt_ref[...]                                     # (d_state, T)
    Ct = Ct_ref[...]                                     # (d_state, T)

    h = h_ref[...]                                       # (d_state, dh) carried state
    ys = []
    for t in range(T):                                   # static unroll: exp/softplus have no
        d_row = delta[t:t + 1, :]                        # dependence on h -> overlap with the
        dA_t = jnp.exp(At * d_row)                       # serial h FMA chain
        h = dA_t * h + Bt[:, t:t + 1] * (d_row * u[t:t + 1, :])
        ys.append(jnp.sum(h * Ct[:, t:t + 1], axis=0, keepdims=True))
    h_ref[...] = h

    y = jnp.concatenate(ys, axis=0) + Dv * u             # (T, dh)
    o_ref[...] = y * (z * jax.nn.sigmoid(z))             # SiLU(z) gate, whole-chunk slab store


def selective_scan(u, dt_raw, z, Bmat, Cmat, At, Dvec, dt_bias):
    """u/dt_raw/z: (B, L, d_inner); Bmat/Cmat: (B, L, d_state); At: (d_state, d_inner)."""
    B, L, Dh = u.shape
    d_state = At.shape[0]
    tL = _choose(L, 32, 8)        # time-chunk (statically unrolled in the kernel)
    tD = _choose(Dh, 512, 128)    # channel block (second parallel grid axis)
    n_c = L // tL
    # Repack B/C so each (d_state, chunk) tile is directly block-addressable
    # (lane-dense enough; kills the old width-1 column layout). Tiny arrays.
    Bt = Bmat.reshape(B, n_c, tL, d_state).transpose(0, 1, 3, 2)
    Ct = Cmat.reshape(B, n_c, tL, d_state).transpose(0, 1, 3, 2)

    act_spec = pl.BlockSpec((None, tL, tD), lambda b, j, c: (b, c, j))
    bc_spec = pl.BlockSpec((None, None, d_state, tL), lambda b, j, c: (b, c, 0, 0))
    vec_spec = pl.BlockSpec((1, tD), lambda b, j, c: (0, j))
    return pl.pallas_call(
        _scan_kernel,
        grid=(B, Dh // tD, n_c),
        in_specs=[act_spec, act_spec, act_spec, bc_spec, bc_spec,
                  pl.BlockSpec((d_state, tD), lambda b, j, c: (0, j)),
                  vec_spec, vec_spec],
        out_specs=pl.BlockSpec((None, tL, tD), lambda b, j, c: (b, c, j)),
        out_shape=jax.ShapeDtypeStruct((B, L, Dh), jnp.float32),
        scratch_shapes=[pltpu.VMEM((d_state, tD), jnp.float32)],
        compiler_params=pltpu.CompilerParams(
            dimension_semantics=("parallel", "parallel", "arbitrary")),
    )(u, dt_raw, z, Bt, Ct, At, Dvec, dt_bias)


# ------------------------------ model wrappers -------------------------------

def mamba_forward(x, in_x_w, in_z_w, out_w, p):
    # One Mamba branch. x: (B, L, d_model). No bias on in/x/out projections
    # (matches Mamba defaults); dt_proj bias is folded into the scan softplus.
    B, L, Dm = x.shape
    d_inner = in_x_w.shape[1]
    M = B * L
    x2 = x.reshape(M, Dm)

    xc = matmul(x2, in_x_w).reshape(B, L, d_inner)      # conv path ("x")
    zg = matmul(x2, in_z_w).reshape(B, L, d_inner)      # gate path ("z")

    u = conv_silu(xc, p['conv_w'], p['conv_b'])         # (B, L, d_inner)

    dlt, Bm, Cm = xproj_dtproj(u.reshape(M, d_inner), p['xproj_dt_wT'],
                               p['xproj_B_wT'], p['xproj_C_wT'], p['dt_proj_wT'])
    y = selective_scan(u, dlt.reshape(B, L, d_inner), zg,
                       Bm.reshape(B, L, D_STATE), Cm.reshape(B, L, D_STATE),
                       p['A_T'], p['D'], p['dt_bias'])
    return matmul(y.reshape(M, d_inner), out_w).reshape(B, L, Dm)


def bimamba_forward(x, lp):
    # BiMambaBlock: fwd_mamba(x) + rev_mamba(x.flip(dims=[-1]))
    # The reference flips the FEATURE axis of the (B, L, D) input. We realize
    # flip(x, -1) @ W == x @ flip(W, 0) with row-flipped shared in_proj weights
    # (precomputed at init) so no per-layer activation copy is needed.
    sh = lp['shared']
    fwd = mamba_forward(x, sh['in_x_wT'], sh['in_z_wT'], sh['out_wT'], lp['fwd'])
    rev = mamba_forward(x, sh['in_x_wT_rev'], sh['in_z_wT_rev'], sh['out_wT'],
                        lp['rev'])
    return fwd + rev


def mixer_model_forward(input_ids, t, params):
    # TODO(synk): embedding gather stays in plain JAX (a DMA-gather kernel is possible).
    hidden = params['embedding'][input_ids]              # (B, L, d_model)
    B, L = input_ids.shape
    Dm = hidden.shape[-1]

    # PositionalEmbedding (sin/cos features, JAX glue) + 2-layer tanh-GELU MLP kernel.
    half = Dm // 2
    scale = -math.log(10000.0) / (half - 1)
    freqs = jnp.exp(scale * jnp.arange(half, dtype=jnp.float32))
    emb = t.astype(jnp.float32)[:, None] * freqs
    emb = jnp.concatenate([jnp.sin(emb), jnp.cos(emb)], axis=-1)     # (B, d_model)
    temb = temb_mlp(emb, params['t_w1'], params['t_b1'],
                    params['t_w2'], params['t_b2']).reshape(B, 1, Dm)

    residual = None
    for lp in params['layers']:
        # residual = hidden (+ residual) + temb ; hidden = Mixer(LN(residual))
        normed, residual = add_layernorm(hidden, residual, temb,
                                         lp['norm_w'], lp['norm_b'])
        hidden = bimamba_forward(normed, lp)

    normed, _ = add_layernorm(hidden, residual, None,
                              params['normf_w'], params['normf_b'])
    return normed


# ------------------------------ params (synthetic) ---------------------------

def init_params(key, d_model, n_layer, vocab_size,
                d_state=D_STATE, d_conv=D_CONV, expand=EXPAND):
    d_inner = expand * d_model
    dt_rank = math.ceil(d_model / 16)
    keys = jax.random.split(key, 4 + n_layer)
    bf16 = jnp.bfloat16

    def nrm(k, shape, s=0.02):
        return (s * jax.random.normal(k, shape)).astype(jnp.float32)

    p = {
        'embedding': nrm(keys[0], (vocab_size, d_model)),
        't_w1': nrm(keys[1], (d_model, d_model)).astype(bf16),
        't_b1': jnp.zeros((1, d_model), jnp.float32),
        't_w2': nrm(keys[2], (d_model, d_model)).astype(bf16),
        't_b2': jnp.zeros((1, d_model), jnp.float32),
        'normf_w': jnp.ones((1, d_model), jnp.float32),
        'normf_b': jnp.zeros((1, d_model), jnp.float32),
    }

    def mamba_dir(kset):
        # A_log init per Mamba (S4D-real): A = -exp(A_log) = -arange(1..d_state)
        # per channel. Real checkpoints must apply -exp(A_log) before loading.
        A = jnp.tile(jnp.arange(1, d_state + 1, dtype=jnp.float32)[None, :],
                     (d_inner, 1))
        return {
            'conv_w': nrm(kset[0], (d_conv, d_inner), 0.2),
            'conv_b': jnp.zeros((1, d_inner), jnp.float32),
            # x_proj weight pre-split into dt / B / C column groups (bf16 MXU operands)
            'xproj_dt_wT': nrm(kset[1], (d_inner, dt_rank)).astype(bf16),
            'xproj_B_wT': nrm(kset[2], (d_inner, d_state)).astype(bf16),
            'xproj_C_wT': nrm(kset[3], (d_inner, d_state)).astype(bf16),
            'dt_proj_wT': nrm(kset[4], (dt_rank, d_inner), 0.5).astype(bf16),
            'dt_bias': nrm(kset[5], (1, d_inner), 0.1),
            'A_T': (-A).T,                               # (d_state, d_inner)
            'D': jnp.ones((1, d_inner), jnp.float32),
        }

    layers = []
    for i in range(n_layer):
        lk = jax.random.split(keys[4 + i], 15)
        w_in_x = nrm(lk[0], (d_model, d_inner))
        w_in_z = nrm(lk[1], (d_model, d_inner))
        layers.append({
            'norm_w': jnp.ones((1, d_model), jnp.float32),
            'norm_b': jnp.zeros((1, d_model), jnp.float32),
            # in_proj / out_proj shared between fwd and rev Mamba (BiMambaBlock ties them);
            # *_rev are row-flipped copies implementing the feature-axis flip of the input.
            'shared': {
                'in_x_wT': w_in_x.astype(bf16),
                'in_z_wT': w_in_z.astype(bf16),
                'in_x_wT_rev': jnp.flip(w_in_x, axis=0).astype(bf16),
                'in_z_wT_rev': jnp.flip(w_in_z, axis=0).astype(bf16),
                'out_wT': nrm(lk[2], (d_inner, d_model)).astype(bf16),
            },
            'fwd': mamba_dir(lk[3:9]),
            'rev': mamba_dir(lk[9:15]),
        })
    p['layers'] = layers
    return p


# ---------------------------------- main --------------------------------------

if __name__ == "__main__":
    d_model, n_layer, vocab_size = 32, 2, 16
    B, L = 2, 8

    key = jax.random.PRNGKey(0)
    kp, kid, kt = jax.random.split(key, 3)
    params = init_params(kp, d_model, n_layer, vocab_size)

    input_ids = jax.random.randint(kid, (B, L), 0, vocab_size)
    t = jax.random.uniform(kt, (B,), minval=0.0, maxval=100.0)

    out = mixer_model_forward(input_ids, t, params)
    out = jax.block_until_ready(out)

    assert out.shape == (B, L, d_model)
    assert bool(jnp.all(jnp.isfinite(out)))
    print("KERNEL_OK")
</pallas_src>

<mosaic_0001>
module attributes {stable_mosaic.version = 11 : i64} {
  func.func @_temb_mlp_kernel(%arg0: memref<2x32xf32, #tpu.memory_space<vmem>>, %arg1: memref<32x32xbf16, #tpu.memory_space<vmem>>, %arg2: memref<1x32xf32, #tpu.memory_space<vmem>>, %arg3: memref<32x32xbf16, #tpu.memory_space<vmem>>, %arg4: memref<1x32xf32, #tpu.memory_space<vmem>>, %arg5: memref<2x32xf32, #tpu.memory_space<vmem>>) attributes {dimension_semantics = [], scalar_prefetch = 0 : i64, scratch_operands = 0 : i64, tpu.core_type = #tpu.core_type<tc>} {
    %c0 = arith.constant 0 : index
    %c0_0 = arith.constant 0 : index
    %0 = vector.load %arg0[%c0, %c0_0] : memref<2x32xf32, #tpu.memory_space<vmem>>, vector<2x32xf32>
    %1 = arith.truncf %0 : vector<2x32xf32> to vector<2x32xbf16>
    %c0_1 = arith.constant 0 : index
    %c0_2 = arith.constant 0 : index
    %2 = vector.load %arg1[%c0_1, %c0_2] : memref<32x32xbf16, #tpu.memory_space<vmem>>, vector<32x32xbf16>
    %cst = arith.constant dense<0.000000e+00> : vector<2x32xf32>
    %3 = tpu.matmul %1, %2, %cst {dimension_numbers = #tpu.dot_dimension_numbers<[1], [0], [0], [1], [0, 0, 1, 1], [], []>} : vector<2x32xbf16>, vector<32x32xbf16>, vector<2x32xf32> -> vector<2x32xf32>
    %c0_3 = arith.constant 0 : index
    %c0_4 = arith.constant 0 : index
    %4 = vector.load %arg2[%c0_3, %c0_4] : memref<1x32xf32, #tpu.memory_space<vmem>>, vector<1x32xf32>
    %5 = vector.broadcast %4 : vector<1x32xf32> to vector<2x32xf32>
    %6 = arith.addf %3, %5 : vector<2x32xf32>
    %7 = arith.mulf %6, %6 : vector<2x32xf32>
    %8 = arith.mulf %6, %7 : vector<2x32xf32>
    %cst_5 = arith.constant 4.471500e-02 : f32
    %9 = vector.broadcast %cst_5 : f32 to vector<2x32xf32>
    %10 = arith.mulf %9, %8 : vector<2x32xf32>
    %11 = arith.addf %6, %10 : vector<2x32xf32>
    %cst_6 = arith.constant 0.797884583 : f32
    %12 = vector.broadcast %cst_6 : f32 to vector<2x32xf32>
    %13 = arith.mulf %12, %11 : vector<2x32xf32>
    %14 = math.tanh %13 : vector<2x32xf32>
    %cst_7 = arith.constant 1.000000e+00 : f32
    %15 = vector.broadcast %cst_7 : f32 to vector<2x32xf32>
    %16 = arith.addf %15, %14 : vector<2x32xf32>
    %cst_8 = arith.constant 5.000000e-01 : f32
    %17 = vector.broadcast %cst_8 : f32 to vector<2x32xf32>
    %18 = arith.mulf %17, %16 : vector<2x32xf32>
    %19 = arith.mulf %6, %18 : vector<2x32xf32>
    %20 = arith.truncf %19 : vector<2x32xf32> to vector<2x32xbf16>
    %c0_9 = arith.constant 0 : index
    %c0_10 = arith.constant 0 : index
    %21 = vector.load %arg3[%c0_9, %c0_10] : memref<32x32xbf16, #tpu.memory_space<vmem>>, vector<32x32xbf16>
    %cst_11 = arith.constant dense<0.000000e+00> : vector<2x32xf32>
    %22 = tpu.matmul %20, %21, %cst_11 {dimension_numbers = #tpu.dot_dimension_numbers<[1], [0], [0], [1], [0, 0, 1, 1], [], []>} : vector<2x32xbf16>, vector<32x32xbf16>, vector<2x32xf32> -> vector<2x32xf32>
    %c0_12 = arith.constant 0 : index
    %c0_13 = arith.constant 0 : index
    %23 = vector.load %arg4[%c0_12, %c0_13] : memref<1x32xf32, #tpu.memory_space<vmem>>, vector<1x32xf32>
    %24 = vector.broadcast %23 : vector<1x32xf32> to vector<2x32xf32>
    %25 = arith.addf %22, %24 : vector<2x32xf32>
    %26 = arith.mulf %25, %25 : vector<2x32xf32>
    %27 = arith.mulf %25, %26 : vector<2x32xf32>
    %cst_14 = arith.constant 4.471500e-02 : f32
    %28 = vector.broadcast %cst_14 : f32 to vector<2x32xf32>
    %29 = arith.mulf %28, %27 : vector<2x32xf32>
    %30 = arith.addf %25, %29 : vector<2x32xf32>
    %cst_15 = arith.constant 0.797884583 : f32
    %31 = vector.broadcast %cst_15 : f32 to vector<2x32xf32>
    %32 = arith.mulf %31, %30 : vector<2x32xf32>
    %33 = math.tanh %32 : vector<2x32xf32>
    %cst_16 = arith.constant 1.000000e+00 : f32
    %34 = vector.broadcast %cst_16 : f32 to vector<2x32xf32>
    %35 = arith.addf %34, %33 : vector<2x32xf32>
    %cst_17 = arith.constant 5.000000e-01 : f32
    %36 = vector.broadcast %cst_17 : f32 to vector<2x32xf32>
    %37 = arith.mulf %36, %35 : vector<2x32xf32>
    %38 = arith.mulf %25, %37 : vector<2x32xf32>
    %c0_18 = arith.constant 0 : index
    %c0_19 = arith.constant 0 : index
    %39 = vector.load %arg5[%c0_18, %c0_19] : memref<2x32xf32, #tpu.memory_space<vmem>>, vector<2x32xf32>
    tpu.vector_store %arg5[%c0_18, %c0_19], %38 {strides = array<i32>} : memref<2x32xf32, #tpu.memory_space<vmem>>, vector<2x32xf32>,
    return
  }
}

</mosaic_0001>

<llo_original>
// kernel: tpu_custom_call.1
$region0: #{tpu_custom_call.1}
  #allocation0 [shape = 'u32[]', space=smem, size = 0x4, offset = 0x4, fixed_abs, tag = 'smem constant byte address 0x4 - core index']
  #allocation1 [shape = 'u32[144,128]{1,0:T(1,128)}', space=vmem, size = 0x12000, scoped, tag = 'internal scratch']
  %s0 = inlined_call_operand.hbm [shape: f32[2,32], index: 0, kind: input, shape index: {}]
  %s1 = inlined_call_operand.hbm [shape: bf16[32,32], index: 1, kind: input, shape index: {}]
  %s2 = inlined_call_operand.vmem [shape: f32[1,32], index: 2, kind: input, shape index: {}]
  %s3 = inlined_call_operand.hbm [shape: bf16[32,32], index: 3, kind: input, shape index: {}]
  %s4 = inlined_call_operand.vmem [shape: f32[1,32], index: 4, kind: input, shape index: {}]
  %s5 = inlined_call_operand.hbm [shape: f32[2,32], index: 5, kind: output, shape index: {}]
  %s6 = sld [smem:[#allocation0]]
  $region42: #{tpu_custom_call.1} parent=0
    _
  %s8 = ssub.s32 1, %s6
  %s9 = scalar_select 0, %s8, %s6
  $region1: #{tpu_custom_call.1} parent=0
    #allocation2 [shape = 'u8[1024]{0}', space=vmem, size = 0x400, scoped, tag = 'input window, operand 0, single buffered']
    #allocation3 [shape = 's32[1]{0}', space=sflag, size = 0x4, scoped, tag = 'scoped memory for tpu_custom_call.1']
    #allocation4 [shape = 's32[1]{0}', space=sflag, size = 0x4, scoped, tag = 'scoped memory for tpu_custom_call.1']
    #allocation5 [shape = 'u8[8192]{0}', space=vmem, size = 0x2000, scoped, tag = 'input window, operand 1, single buffered']
    #allocation6 [shape = 's32[1]{0}', space=sflag, size = 0x4, scoped, tag = 'scoped memory for tpu_custom_call.1']
    #allocation7 [shape = 'u8[8192]{0}', space=vmem, size = 0x2000, scoped, tag = 'input window, operand 3, single buffered']
    #allocation8 [shape = 'u8[1024]{0}', space=vmem, size = 0x400, scoped, tag = 'output window, operand 0, single buffered']
    %10 = vsyncpa [#allocation3], 0
    %11 = vsyncpa [#allocation6], 0
    %12 = vsyncpa [#allocation4], 0
    // Predicated region
    $region2: #{tpu_custom_call.1} parent=1 // pred_check
      _
    $region3: #{tpu_custom_call.1} parent=1 // pred_check_branch
      %14 = sbr.rel (0) target = $region5
    $region4: #{tpu_custom_call.1} parent=1 // pred_region
      %s16 = ssub.s32 32, 32
      %17 = vsyncadd [#allocation3], %s16
      %s19 = sshll.u32 [#allocation2], 4
      %s20 = int_to_ptr.vmem [resolvable:$true] %s19
      %22 = dma.hbm_to_vmem [thread:$0]  %s0, 32, %s20, [#allocation3]
    $region5: #{tpu_custom_call.1} parent=1 // pred_fallthru
      _
    // Predicated region
    $region6: #{tpu_custom_call.1} parent=1 // pred_check
      _
    $region7: #{tpu_custom_call.1} parent=1 // pred_check_branch
      %24 = sbr.rel (0) target = $region9
    $region8: #{tpu_custom_call.1} parent=1 // pred_region
      %s26 = ssub.s32 256, 256
      %27 = vsyncadd [#allocation6], %s26
      %s28 = sshll.u32 [#allocation5], 4
      %s29 = int_to_ptr.vmem [resolvable:$true] %s28
      %34 = dma.hbm_to_vmem [thread:$0]  %s1, 256, %s29, [#allocation6], 64, 64, 4
    $region9: #{tpu_custom_call.1} parent=1 // pred_fallthru
      _
    // Predicated region
    $region10: #{tpu_custom_call.1} parent=1 // pred_check
      _
    $region11: #{tpu_custom_call.1} parent=1 // pred_check_branch
      %36 = sbr.rel (0) target = $region13
    $region12: #{tpu_custom_call.1} parent=1 // pred_region
      _
    $region13: #{tpu_custom_call.1} parent=1 // pred_fallthru
      _
    // Predicated region
    $region14: #{tpu_custom_call.1} parent=1 // pred_check
      _
    $region15: #{tpu_custom_call.1} parent=1 // pred_check_branch
      %38 = sbr.rel (0) target = $region17
    $region16: #{tpu_custom_call.1} parent=1 // pred_region
      %s40 = ssub.s32 256, 256
      %41 = vsyncadd [#allocation6], %s40
      %s42 = sshll.u32 [#allocation7], 4
      %s43 = int_to_ptr.vmem [resolvable:$true] %s42
      %48 = dma.hbm_to_vmem [thread:$0]  %s3, 256, %s43, [#allocation6], 64, 64, 4
    $region17: #{tpu_custom_call.1} parent=1 // pred_fallthru
      _
    // Predicated region
    $region18: #{tpu_custom_call.1} parent=1 // pred_check
      _
    $region19: #{tpu_custom_call.1} parent=1 // pred_check_branch
      %50 = sbr.rel (0) target = $region21
    $region20: #{tpu_custom_call.1} parent=1 // pred_region
      _
    $region21: #{tpu_custom_call.1} parent=1 // pred_fallthru
      _
    // Predicated region
    $region22: #{tpu_custom_call.1} parent=1 // pred_check
      _
    $region23: #{tpu_custom_call.1} parent=1 // pred_check_branch
      %52 = sbr.rel (0) target = $region25
    $region24: #{tpu_custom_call.1} parent=1 // pred_region
      %53 = dma.done [#allocation3], 32
    $region25: #{tpu_custom_call.1} parent=1 // pred_fallthru
      _
    // Predicated region
    $region26: #{tpu_custom_call.1} parent=1 // pred_check
      _
    $region27: #{tpu_custom_call.1} parent=1 // pred_check_branch
      %55 = sbr.rel (0) target = $region29
    $region28: #{tpu_custom_call.1} parent=1 // pred_region
      %56 = dma.done [#allocation6], 256
    $region29: #{tpu_custom_call.1} parent=1 // pred_fallthru
      _
    // Predicated region
    $region30: #{tpu_custom_call.1} parent=1 // pred_check
      _
    $region31: #{tpu_custom_call.1} parent=1 // pred_check_branch
      %58 = sbr.rel (0) target = $region33
    $region32: #{tpu_custom_call.1} parent=1 // pred_region
      %59 = dma.done [#allocation6], 256
    $region33: #{tpu_custom_call.1} parent=1 // pred_fallthru
      _
    %v61 = vld [vmem:[#allocation2] sm:$0x3]
    %v62 = vpack.c.bf16 %v61, %v61
    %v63 = vld [vmem:[#allocation5] sm:$0xf]
    %v64 = vld [vmem:[#allocation5 + $0x4] sm:$0xf]
    %v65 = vld [vmem:[#allocation5 + $0x8] sm:$0xf]
    %v66 = vld [vmem:[#allocation5 + $0xc] sm:$0xf]
    %v67 = vld [vmem:[%s2] sm:$0x1]
    %v69 = vlaneseq
    %v70 = vshrl.u32 %v69, 7
    %v71 = vsub.s32 0, %v70
    %v72 = vrot.slane %v67, %v71
    %v78 = vunpack.c.l.b16 %v63
    %v79 = vunpack.c.l.b16 %v64
    %v80 = vunpack.c.l.b16 %v65
    %v81 = vunpack.c.l.b16 %v66
    %v82 = vpack.c.b16 %v79, %v78
    %v83 = vpack.c.b16 %v81, %v80
    %vm86 = vcmask 261120
    %v88 = vsel %vm86, %v62, 0
    %90 = vmatprep.subr.bf16.mxu0 0
    %91 = vmatpush1.bf16.msra.mxu0 0
    %92 = vmatprep.subr.bf16.mxu0 0
    %93 = vmatpush1.bf16.msra.mxu0 0
    %94 = vmatprep.subr.bf16.mxu0 0
    %95 = vmatpush1.bf16.msra.mxu0 0
    %96 = vmatprep.subr.bf16.mxu0 0
    %97 = vmatpush1.bf16.msra.mxu0 0
    %98 = vmatprep.subr.bf16.mxu0 0
    %99 = vmatpush1.bf16.msra.mxu0 0
    %100 = vmatprep.subr.bf16.mxu0 0
    %101 = vmatpush1.bf16.msra.mxu0 0
    %102 = vmatprep.subr.bf16.mxu0 0
    %103 = vmatpush1.bf16.msra.mxu0 %v83
    %104 = vmatprep.subr.bf16.mxu0 0
    %105 = vmatpush1.bf16.msra.mxu0 %v82
    %106 = vmatprep.subr.bf16.mxu0 0
    %107 = vmatpush2.bf16.msra.mxu0 0
    %108 = vmatprep.subr.bf16.mxu0 0
    %109 = vmatpush2.bf16.msra.mxu0 0
    %110 = vmatprep.subr.bf16.mxu0 0
    %111 = vmatpush2.bf16.msra.mxu0 0
    %112 = vmatprep.subr.bf16.mxu0 0
    %113 = vmatpush2.bf16.msra.mxu0 0
    %114 = vmatprep.subr.bf16.mxu0 0
    %115 = vmatpush2.bf16.msra.mxu0 0
    %116 = vmatprep.subr.bf16.mxu0 0
    %117 = vmatpush2.bf16.msra.mxu0 0
    %118 = vmatprep.subr.bf16.mxu0 0
    %119 = vmatpush2.bf16.msra.mxu0 0
    %120 = vmatprep.subr.bf16.mxu0 0
    %121 = vmatpush2.bf16.msra.mxu0 0
    %122 = vmatprep.mubr.bf16.mxu0 0
    %123 = vmatmul.mubr.bf16.gmra.mxu0 %v88
    %v124 = vpop.f32.mrf.mxu0
    %v125 = vadd.f32 %v72, %v124
    %v126 = vpop.f32.mrf.mxu0
    %v127 = vpop.f32.mrf.mxu0
    %v128 = vpop.f32.mrf.mxu0
    %129 = vdwg.mxu0
    %v130 = vmul.f32 %v125, %v125
    %v131 = vmul.f32 %v125, %v130
    %v132 = vmul.f32 %v131, 0.044715
    %v133 = vadd.f32 %v125, %v132
    %v134 = vmul.f32 %v133, 0.7978846
    %v135 = vtanh.pop %v134
    %v136 = vadd.f32 %v135, 1.0
    %v137 = vmul.f32 %v136, 0.5
    %v138 = vmul.f32 %v125, %v137
    %v139 = vpack.c.bf16 %v138, %v138
    %v140 = vld [vmem:[#allocation7] sm:$0xf]
    %v141 = vld [vmem:[#allocation7 + $0x4] sm:$0xf]
    %v142 = vld [vmem:[#allocation7 + $0x8] sm:$0xf]
    %v143 = vld [vmem:[#allocation7 + $0xc] sm:$0xf]
    %v144 = vld [vmem:[%s4] sm:$0x1]
    %v146 = vlaneseq
    %v147 = vshrl.u32 %v146, 7
    %v148 = vsub.s32 0, %v147
    %v149 = vrot.slane %v144, %v148
    %v155 = vunpack.c.l.b16 %v140
    %v156 = vunpack.c.l.b16 %v141
    %v157 = vunpack.c.l.b16 %v142
    %v158 = vunpack.c.l.b16 %v143
    %v159 = vpack.c.b16 %v156, %v155
    %v160 = vpack.c.b16 %v158, %v157
    %v164 = vsel %vm86, %v139, 0
    %166 = vmatprep.subr.bf16.mxu0 0
    %167 = vmatpush1.bf16.msra.mxu0 0
    %168 = vmatprep.subr.bf16.mxu0 0
    %169 = vmatpush1.bf16.msra.mxu0 0
    %170 = vmatprep.subr.bf16.mxu0 0
    %171 = vmatpush1.bf16.msra.mxu0 0
    %172 = vmatprep.subr.bf16.mxu0 0
    %173 = vmatpush1.bf16.msra.mxu0 0
    %174 = vmatprep.subr.bf16.mxu0 0
    %175 = vmatpush1.bf16.msra.mxu0 0
    %176 = vmatprep.subr.bf16.mxu0 0
    %177 = vmatpush1.bf16.msra.mxu0 0
    %178 = vmatprep.subr.bf16.mxu0 0
    %179 = vmatpush1.bf16.msra.mxu0 %v160
    %180 = vmatprep.subr.bf16.mxu0 0
    %181 = vmatpush1.bf16.msra.mxu0 %v159
    %182 = vmatprep.subr.bf16.mxu0 0
    %183 = vmatpush2.bf16.msra.mxu0 0
    %184 = vmatprep.subr.bf16.mxu0 0
    %185 = vmatpush2.bf16.msra.mxu0 0
    %186 = vmatprep.subr.bf16.mxu0 0
    %187 = vmatpush2.bf16.msra.mxu0 0
    %188 = vmatprep.subr.bf16.mxu0 0
    %189 = vmatpush2.bf16.msra.mxu0 0
    %190 = vmatprep.subr.bf16.mxu0 0
    %191 = vmatpush2.bf16.msra.mxu0 0
    %192 = vmatprep.subr.bf16.mxu0 0
    %193 = vmatpush2.bf16.msra.mxu0 0
    %194 = vmatprep.subr.bf16.mxu0 0
    %195 = vmatpush2.bf16.msra.mxu0 0
    %196 = vmatprep.subr.bf16.mxu0 0
    %197 = vmatpush2.bf16.msra.mxu0 0
    %198 = vmatprep.mubr.bf16.mxu0 0
    %199 = vmatmul.mubr.bf16.gmra.mxu0 %v164
    %v200 = vpop.f32.mrf.mxu0
    %v201 = vadd.f32 %v149, %v200
    %v202 = vpop.f32.mrf.mxu0
    %v203 = vpop.f32.mrf.mxu0
    %v204 = vpop.f32.mrf.mxu0
    %205 = vdwg.mxu0
    %v206 = vmul.f32 %v201, %v201
    %v207 = vmul.f32 %v201, %v206
    %v208 = vmul.f32 %v207, 0.044715
    %v209 = vadd.f32 %v201, %v208
    %v210 = vmul.f32 %v209, 0.7978846
    %v211 = vtanh.pop %v210
    %v212 = vadd.f32 %v211, 1.0
    %v213 = vmul.f32 %v212, 0.5
    %v214 = vmul.f32 %v201, %v213
    %vm215 = vcmask 254976
    %216 = vst.msk [vmem:[#allocation8] sm:$0x3] %vm215, %v214
    // Predicated region
    $region34: #{tpu_custom_call.1} parent=1 // pred_check
      _
    $region35: #{tpu_custom_call.1} parent=1 // pred_check_branch
      %218 = sbr.rel (0) target = $region37
    $region36: #{tpu_custom_call.1} parent=1 // pred_region
      %s220 = ssub.s32 32, 32
      %221 = vsyncadd [#allocation4], %s220
      %s223 = sshll.u32 [#allocation8], 4
      %s224 = int_to_ptr.vmem [resolvable:$true] %s223
      %226 = dma.vmem_to_hbm [thread:$0]  %s224, 32, %s5, [#allocation4]
    $region37: #{tpu_custom_call.1} parent=1 // pred_fallthru
      _
    // Predicated region
    $region38: #{tpu_custom_call.1} parent=1 // pred_check
      _
    $region39: #{tpu_custom_call.1} parent=1 // pred_check_branch
      %228 = sbr.rel (0) target = $region41
    $region40: #{tpu_custom_call.1} parent=1 // pred_region
      %229 = dma.done [#allocation4], 32
    $region41: #{tpu_custom_call.1} parent=1 // pred_fallthru
      _
    %230 = vsyncpa [#allocation3], 1
    %231 = vsyncpa [#allocation6], 1
    %232 = vsyncpa [#allocation4], 1

</llo_original>
